<compile_context>
chip_gen: v6e
topology: v6e:2x2x1
jax: 0.10.0
libtpu: 0.0.40
codegen_flags: <defaults>
</compile_context>

<pallas_src>
import functools
import math

import numpy as np
import jax
import jax.numpy as jnp
from jax.experimental import pallas as pl
from jax.experimental.pallas import tpu as pltpu


# ---------------------------------------------------------------------------
# Pooling weights (host side, cached per geometry)
# ---------------------------------------------------------------------------
def _adaptive_pool_matrix(in_size: int, out_size: int) -> np.ndarray:
    """Row i averages input indices [floor(i*I/O), ceil((i+1)*I/O)) — exactly
    PyTorch's adaptive_avg_pool2d bin boundaries."""
    m = np.zeros((out_size, in_size), dtype=np.float32)
    for i in range(out_size):
        start = (i * in_size) // out_size
        end = -((-(i + 1) * in_size) // out_size)      # ceil((i+1)*I/O)
        m[i, start:end] = 1.0 / float(end - start)
    return m


@functools.lru_cache(maxsize=None)
def _pool_weights_np(H, W, OH, OW):
    a_h = _adaptive_pool_matrix(H, OH)                 # (OH, H)
    a_w = _adaptive_pool_matrix(W, OW)                 # (OW, W)
    # pooled[b, i*OW + j] = sum_{h,w} x[b, h*W + w] * a_h[i,h] * a_w[j,w]
    return np.ascontiguousarray(np.kron(a_h, a_w).T)   # (H*W, OH*OW) f32


@functools.lru_cache(maxsize=None)
def _pool_weights_dev(H, W, OH, OW, dtype_name):
    return jnp.asarray(_pool_weights_np(H, W, OH, OW), dtype=dtype_name)


# ---------------------------------------------------------------------------
# Hardware-aware sizing
# ---------------------------------------------------------------------------
def _vmem_capacity_bytes() -> int:
    try:
        info = pltpu.get_tpu_info()
        cap = int(getattr(info, "vmem_capacity_bytes", 0) or 0)
        if cap > 0:
            return cap
    except Exception:
        pass
    return 64 * 1024 * 1024      # conservative fallback (v7x per-TC VMEM)


_MAX_GROUPS = 64                 # cap on statically-unrolled channel groups


def _round_down(v, m):
    return (v // m) * m


def _choose_grouped_rows(B, N, C, bytes_per_row, slab_target, slab_cap):
    """Row-slab size tb = nb*C (whole mask rows per slab). Keeps tb % 8 == 0
    (or tb == B), respects the per-slab VMEM cap, and keeps >= 2 grid steps
    when there is enough data to shard across two TensorCores."""
    group_bytes = C * bytes_per_row
    m = 8 // math.gcd(C, 8)                       # nb granularity -> (nb*C) % 8 == 0
    nb = max(1, slab_target // max(1, group_bytes))
    nb = max(m, _round_down(nb, m))
    nb = min(nb, max(m, _round_down(_MAX_GROUPS, m)))
    while nb > m and nb * group_bytes > slab_cap:
        nb -= m
    if N > m and B * bytes_per_row >= 2 * slab_target:
        nb = max(m, min(nb, _round_down(N - 1, m)))   # grid >= 2 (megacore)
    if nb >= N:
        return B, N                                    # single full block
    return nb * C, nb


def _choose_plain_rows(B, bytes_per_row, slab_target, slab_cap):
    tb = max(8, _round_down(slab_target // max(1, bytes_per_row), 8))
    tb = min(tb, max(8, _round_down(slab_cap // max(1, bytes_per_row), 8)))
    if B > 16 and B * bytes_per_row >= 2 * slab_target:
        tb = min(tb, max(8, _round_down(B // 2, 8)))   # keep >= 2 grid steps
    if tb >= B:
        return B
    return tb


# ---------------------------------------------------------------------------
# Kernels
# ---------------------------------------------------------------------------
def _make_kernel(eps, C, nb, grouped):
    eps = float(eps)

    def _inv(d):
        # EUP reciprocal seed + two Newton-Raphson steps (rel err ~ seed_err^4).
        r = pl.reciprocal(d, approx=True)
        r = r * (2.0 - d * r)
        r = r * (2.0 - d * r)
        return r

    if grouped:
        def kernel(pt_ref, x_ref, den_ref, o_ref):
            # pt_ref : (H*W, OH*OW)   pooling weights, VMEM-resident
            # x_ref  : (tb, H*W)      row slab in native dtype (bf16 stays bf16)
            # den_ref: (N_pad, OH*OW) pooled-mask denominator, VMEM-resident
            # o_ref  : (tb, OH*OW)
            px = jnp.dot(x_ref[...], pt_ref[...],
                         preferred_element_type=jnp.float32)
            n0 = pl.program_id(0) * nb          # first mask row of this slab
            for k in range(nb):                 # static unroll, nb <= _MAX_GROUPS
                inv = _inv(den_ref[pl.ds(n0 + k, 1), :] + eps)   # (1, OH*OW)
                o_ref[pl.ds(k * C, C), :] = (
                    px[k * C:(k + 1) * C, :] * inv).astype(o_ref.dtype)
    else:
        def kernel(pt_ref, x_ref, den_ref, o_ref):
            # den_ref: (tb, OH*OW) per-row denominator streamed with x
            px = jnp.dot(x_ref[...], pt_ref[...],
                         preferred_element_type=jnp.float32)
            o_ref[...] = (px * _inv(den_ref[...] + eps)).astype(o_ref.dtype)

    return kernel


# ---------------------------------------------------------------------------
# Wrapper
# ---------------------------------------------------------------------------
def adaptive_avg_pool2d_ignore_padding(x, mask, output_size, eps=1e-9,
                                       slab_target_bytes=None):
    """x: (N, C, H, W); mask: (N, 1, H, W) or (N, C, H, W).
    Returns (N, C, OH, OW) float32 — same semantics as the PyTorch module."""
    if isinstance(output_size, int):
        output_size = (output_size, output_size)
    N, C, H, W = x.shape
    OH, OW = output_size
    HW, OHW = H * W, OH * OW
    B = N * C

    Nm, Cm, Hm, Wm = mask.shape
    assert (Nm, Hm, Wm) == (N, H, W) and Cm in (1, C), \
        "mask must be (N, 1, H, W) or (N, C, H, W)"

    # --- operands -----------------------------------------------------------
    # bf16 x stays bf16 (native MXU dtype, weights follow); anything else runs
    # in f32. Note: bf16 weights quantize 1/bin_area (~2^-8 rel) — only taken
    # when the model itself is bf16.
    if x.dtype == jnp.bfloat16:
        w_dtype_name = "bfloat16"
    else:
        w_dtype_name = "float32"
        if x.dtype != jnp.float32:
            x = x.astype(jnp.float32)
    pt = _pool_weights_dev(H, W, OH, OW, w_dtype_name)        # (HW, OHW)
    pt_f32 = _pool_weights_dev(H, W, OH, OW, "float32")

    x_flat = x.reshape(B, HW)

    # Tiny pooled-mask denominator (N*Cm, OH*OW); the broadcast mask is never
    # materialized at (N, C, H, W).  (Numerator dot uses default MXU precision;
    # accepted drift, well inside 1e-4.)
    mask_flat = mask.astype(jnp.float32).reshape(Nm * Cm, HW)
    den_small = jnp.dot(mask_flat, pt_f32,
                        precision=jax.lax.Precision.HIGHEST)   # (N*Cm, OHW)

    # --- generation-aware slab sizing ----------------------------------------
    vmem_phys = max(_vmem_capacity_bytes(), 32 * 1024 * 1024)
    slab_cap = vmem_phys // 8                      # v7x: 8 MiB, v5e/v6e: 16 MiB
    if slab_target_bytes is None:
        slab_target_bytes = max(2 * 1024 * 1024, vmem_phys // 16)
    slab_target = int(slab_target_bytes)
    bytes_per_row = HW * x_flat.dtype.itemsize

    pt_bytes = HW * OHW * pt.dtype.itemsize
    if pt_bytes > vmem_phys // 3:
        # TODO(synk): separable two-stage pooling for huge H*W x OH*OW.
        raise NotImplementedError(
            "pooling-weight matrix too large for VMEM; needs separable pooling")

    grouped = (Cm == 1 and C > 1 and C * bytes_per_row <= slab_cap)

    if grouped:
        tb, nb = _choose_grouped_rows(B, N, C, bytes_per_row,
                                      slab_target, slab_cap)
        # Pad the resident denominator so group reads of the trailing (partial)
        # slab stay in bounds; padded rows (value 1.0) only feed discarded rows.
        n_pad = ((N + nb - 1 + 7) // 8) * 8
        den_arg = jnp.concatenate(
            [den_small, jnp.ones((n_pad - N, OHW), jnp.float32)], axis=0)
        den_spec = pl.BlockSpec((n_pad, OHW), lambda b: (0, 0))    # resident
        den_resident_bytes = n_pad * OHW * 4
        den_stream_bytes = 0
    else:
        tb = _choose_plain_rows(B, bytes_per_row, slab_target, slab_cap)
        nb = 0
        if Cm == C or C == 1:
            den_arg = den_small.reshape(B, OHW)
        else:
            # Whole-batch channel groups exceed the slab cap (huge C*H*W):
            # fall back to a per-row streamed denominator.
            den_arg = jnp.broadcast_to(
                den_small.reshape(N, 1, OHW), (N, C, OHW)).reshape(B, OHW)
        den_spec = pl.BlockSpec((tb, OHW), lambda b: (b, 0))
        den_resident_bytes = 0
        den_stream_bytes = 2 * tb * OHW * 4

    grid = pl.cdiv(B, tb)

    # VMEM budget: double-buffered x/out slabs + resident weights/denominator.
    needed = (2 * tb * bytes_per_row + 2 * tb * OHW * 4 + 2 * pt_bytes
              + den_resident_bytes + den_stream_bytes)
    vmem_limit = int(min(0.8 * vmem_phys,
                         max(32 * 1024 * 1024, 2 * needed + 4 * 1024 * 1024)))

    out_flat = pl.pallas_call(
        _make_kernel(eps, C, nb, grouped),
        out_shape=jax.ShapeDtypeStruct((B, OHW), jnp.float32),
        grid_spec=pltpu.PrefetchScalarGridSpec(
            num_scalar_prefetch=0,
            grid=(grid,),
            in_specs=[
                pl.BlockSpec((HW, OHW), lambda b: (0, 0)),   # weights (resident)
                pl.BlockSpec((tb, HW), lambda b: (b, 0)),    # x row slab
                den_spec,                                    # denominator
            ],
            out_specs=pl.BlockSpec((tb, OHW), lambda b: (b, 0)),
        ),
        compiler_params=pltpu.CompilerParams(
            dimension_semantics=("parallel",),
            vmem_limit_bytes=vmem_limit,
        ),
    )(pt, x_flat, den_arg)

    return out_flat.reshape(N, C, OH, OW)


# ---------------------------------------------------------------------------
# Reference + self-test
# ---------------------------------------------------------------------------
def _reference_numpy(x, mask, output_size, eps):
    """Direct loop reference of F.adaptive_avg_pool2d semantics."""
    x = np.asarray(x, np.float32)
    mask = np.asarray(mask, np.float32)
    N, C, H, W = x.shape
    OH, OW = output_size
    mask = np.broadcast_to(mask, (N, C, H, W))

    def pool(a):
        out = np.zeros((N, C, OH, OW), np.float32)
        for i in range(OH):
            hs = (i * H) // OH
            he = -((-(i + 1) * H) // OH)
            for j in range(OW):
                ws = (j * W) // OW
                we = -((-(j + 1) * W) // OW)
                out[:, :, i, j] = a[:, :, hs:he, ws:we].mean(axis=(2, 3))
        return out

    return pool(x) / (pool(mask) + eps)


if __name__ == "__main__":
    eps = 1e-9
    key = jax.random.PRNGKey(0)

    configs = [
        # (N, C, H, W, (OH, OW), slab_target_override, valid (rows, cols) per n)
        (2, 4, 16, 16, (5, 3), None, [(12, 10), (16, 7)]),          # zero-mask bins
        (5, 4, 8, 8, (3, 2), 2048, [(8, 8), (6, 5), (8, 4), (3, 8), (2, 2)]),
        # config 2 forces a small slab target -> multi-step grid + partial block
    ]

    for (N, C, H, W, osz, slab, valid) in configs:
        key, kx = jax.random.split(key)
        x = jax.random.normal(kx, (N, C, H, W), dtype=jnp.float32)

        mask_np = np.zeros((N, 1, H, W), dtype=np.float32)
        for n, (hv, wv) in enumerate(valid):
            mask_np[n, 0, :hv, :wv] = 1.0
        mask = jnp.asarray(mask_np)

        out = adaptive_avg_pool2d_ignore_padding(
            x, mask, osz, eps, slab_target_bytes=slab)
        out = jax.block_until_ready(out)

        ref = _reference_numpy(np.asarray(x), mask_np, osz, eps)
        np.testing.assert_allclose(np.asarray(out), ref, rtol=1e-4, atol=1e-4)

    print("KERNEL_OK")
</pallas_src>

<mosaic_0001>
module attributes {stable_mosaic.version = 11 : i64} {
  func.func @kernel(%arg0: i32, %arg1: memref<256x15xf32, #tpu.memory_space<vmem>>, %arg2: memref<8x256xf32, #tpu.memory_space<vmem>>, %arg3: memref<8x15xf32, #tpu.memory_space<vmem>>, %arg4: memref<8x15xf32, #tpu.memory_space<vmem>>) attributes {dimension_semantics = [#tpu.dimension_semantics<parallel>], iteration_bounds = array<i64: 1>, scalar_prefetch = 0 : i64, scratch_operands = 0 : i64, tpu.core_type = #tpu.core_type<tc>, window_params = [{pipeline_mode = #tpu.pipeline_mode<synchronous>, transform_indices = @transform_0, window_bounds = array<i64: 256, 15>}, {transform_indices = @transform_1, window_bounds = array<i64: 8, 256>}, {pipeline_mode = #tpu.pipeline_mode<synchronous>, transform_indices = @transform_2, window_bounds = array<i64: 8, 15>}, {transform_indices = @transform_3, window_bounds = array<i64: 8, 15>}]} {
    %c0 = arith.constant 0 : index
    %c0_0 = arith.constant 0 : index
    %0 = vector.load %arg2[%c0, %c0_0] : memref<8x256xf32, #tpu.memory_space<vmem>>, vector<8x256xf32>
    %c0_1 = arith.constant 0 : index
    %c0_2 = arith.constant 0 : index
    %1 = vector.load %arg1[%c0_1, %c0_2] : memref<256x15xf32, #tpu.memory_space<vmem>>, vector<256x15xf32>
    %cst = arith.constant dense<0.000000e+00> : vector<8x15xf32>
    %2 = tpu.matmul %0, %1, %cst {dimension_numbers = #tpu.dot_dimension_numbers<[1], [0], [0], [1], [0, 0, 1, 1], [], []>} : vector<8x256xf32>, vector<256x15xf32>, vector<8x15xf32> -> vector<8x15xf32>
    %c2_i32 = arith.constant 2 : i32
    %3 = arith.muli %arg0, %c2_i32 : i32
    %c0_i32 = arith.constant 0 : i32
    %4 = arith.addi %3, %c0_i32 : i32
    %5 = arith.index_cast %4 : i32 to index
    %c0_3 = arith.constant 0 : index
    %6 = vector.load %arg3[%5, %c0_3] : memref<8x15xf32, #tpu.memory_space<vmem>>, vector<1x15xf32>
    %cst_4 = arith.constant 9.99999971E-10 : f32
    %7 = vector.broadcast %cst_4 : f32 to vector<1x15xf32>
    %8 = arith.addf %6, %7 : vector<1x15xf32>
    %9 = tpu.reciprocal %8 {approx = true} : vector<1x15xf32> -> vector<1x15xf32>
    %10 = arith.mulf %8, %9 : vector<1x15xf32>
    %cst_5 = arith.constant 2.000000e+00 : f32
    %11 = vector.broadcast %cst_5 : f32 to vector<1x15xf32>
    %12 = arith.subf %11, %10 : vector<1x15xf32>
    %13 = arith.mulf %9, %12 : vector<1x15xf32>
    %14 = arith.mulf %8, %13 : vector<1x15xf32>
    %cst_6 = arith.constant 2.000000e+00 : f32
    %15 = vector.broadcast %cst_6 : f32 to vector<1x15xf32>
    %16 = arith.subf %15, %14 : vector<1x15xf32>
    %17 = arith.mulf %13, %16 : vector<1x15xf32>
    %18 = vector.extract_strided_slice %2 {offsets = [0, 0], sizes = [4, 15], strides = [1, 1]} : vector<8x15xf32> to vector<4x15xf32>
    %19 = vector.broadcast %17 : vector<1x15xf32> to vector<4x15xf32>
    %20 = arith.mulf %18, %19 : vector<4x15xf32>
    %c0_7 = arith.constant 0 : index
    %c0_8 = arith.constant 0 : index
    %21 = vector.load %arg4[%c0_7, %c0_8] : memref<8x15xf32, #tpu.memory_space<vmem>>, vector<4x15xf32>
    tpu.vector_store %arg4[%c0_7, %c0_8], %20 {strides = array<i32>} : memref<8x15xf32, #tpu.memory_space<vmem>>, vector<4x15xf32>,
    %c1_i32 = arith.constant 1 : i32
    %22 = arith.addi %3, %c1_i32 : i32
    %23 = arith.index_cast %22 : i32 to index
    %c0_9 = arith.constant 0 : index
    %24 = vector.load %arg3[%23, %c0_9] : memref<8x15xf32, #tpu.memory_space<vmem>>, vector<1x15xf32>
    %cst_10 = arith.constant 9.99999971E-10 : f32
    %25 = vector.broadcast %cst_10 : f32 to vector<1x15xf32>
    %26 = arith.addf %24, %25 : vector<1x15xf32>
    %27 = tpu.reciprocal %26 {approx = true} : vector<1x15xf32> -> vector<1x15xf32>
    %28 = arith.mulf %26, %27 : vector<1x15xf32>
    %cst_11 = arith.constant 2.000000e+00 : f32
    %29 = vector.broadcast %cst_11 : f32 to vector<1x15xf32>
    %30 = arith.subf %29, %28 : vector<1x15xf32>
    %31 = arith.mulf %27, %30 : vector<1x15xf32>
    %32 = arith.mulf %26, %31 : vector<1x15xf32>
    %cst_12 = arith.constant 2.000000e+00 : f32
    %33 = vector.broadcast %cst_12 : f32 to vector<1x15xf32>
    %34 = arith.subf %33, %32 : vector<1x15xf32>
    %35 = arith.mulf %31, %34 : vector<1x15xf32>
    %36 = vector.extract_strided_slice %2 {offsets = [4, 0], sizes = [4, 15], strides = [1, 1]} : vector<8x15xf32> to vector<4x15xf32>
    %37 = vector.broadcast %35 : vector<1x15xf32> to vector<4x15xf32>
    %38 = arith.mulf %36, %37 : vector<4x15xf32>
    %c4 = arith.constant 4 : index
    %c0_13 = arith.constant 0 : index
    %39 = vector.load %arg4[%c4, %c0_13] : memref<8x15xf32, #tpu.memory_space<vmem>>, vector<4x15xf32>
    tpu.vector_store %arg4[%c4, %c0_13], %38 {strides = array<i32>} : memref<8x15xf32, #tpu.memory_space<vmem>>, vector<4x15xf32>,
    return
  }
  func.func @transform_0(%arg0: i32) -> (i32, i32) {
    %c0_i32 = arith.constant 0 : i32
    %c0_i32_0 = arith.constant 0 : i32
    %c0_i32_1 = arith.constant 0 : i32
    return %c0_i32, %c0_i32_0 : i32, i32
  }
  func.func @transform_1(%arg0: i32) -> (i32, i32) {
    %c0_i32 = arith.constant 0 : i32
    %c0_i32_0 = arith.constant 0 : i32
    return %arg0, %c0_i32 : i32, i32
  }
  func.func @transform_2(%arg0: i32) -> (i32, i32) {
    %c0_i32 = arith.constant 0 : i32
    %c0_i32_0 = arith.constant 0 : i32
    %c0_i32_1 = arith.constant 0 : i32
    return %c0_i32, %c0_i32_0 : i32, i32
  }
  func.func @transform_3(%arg0: i32) -> (i32, i32) {
    %c0_i32 = arith.constant 0 : i32
    %c0_i32_0 = arith.constant 0 : i32
    return %arg0, %c0_i32 : i32, i32
  }
}

</mosaic_0001>

<llo_original>
// kernel: tpu_custom_call.1
$region0: #{tpu_custom_call.1}
  #allocation0 [shape = 'u32[]', space=smem, size = 0x4, offset = 0x4, fixed_abs, tag = 'smem constant byte address 0x4 - core index']
  #allocation1 [shape = 'u32[144,128]{1,0:T(1,128)}', space=vmem, size = 0x12000, scoped, tag = 'internal scratch']
  %s0 = inlined_call_operand.vmem [shape: f32[256,15], index: 0, kind: input, shape index: {}]
  %s1 = inlined_call_operand.vmem [shape: f32[8,256], index: 1, kind: input, shape index: {}]
  %s2 = inlined_call_operand.vmem [shape: f32[8,15], index: 2, kind: input, shape index: {}]
  %s3 = inlined_call_operand.hbm [shape: f32[8,15], index: 3, kind: output, shape index: {}]
  %s4 = sld [smem:[#allocation0]]
  $region22: #{tpu_custom_call.1} parent=0
    _
  %s6 = ssub.s32 1, %s4
  %s7 = scalar_select 0, %s6, %s4
  $region1: #{tpu_custom_call.1} parent=0
    #allocation2 [shape = 'u8[4096]{0}', space=vmem, size = 0x1000, scoped, tag = 'output window, operand 0, single buffered']
    #allocation3 [shape = 's32[1]{0}', space=sflag, size = 0x4, scoped, tag = 'scoped memory for tpu_custom_call.1']
    %8 = vsyncpa [#allocation3], 0
    // Predicated region
    $region2: #{tpu_custom_call.1} parent=1 // pred_check
      _
    $region3: #{tpu_custom_call.1} parent=1 // pred_check_branch
      %10 = sbr.rel (0) target = $region5
    $region4: #{tpu_custom_call.1} parent=1 // pred_region
      _
    $region5: #{tpu_custom_call.1} parent=1 // pred_fallthru
      _
    // Predicated region
    $region6: #{tpu_custom_call.1} parent=1 // pred_check
      _
    $region7: #{tpu_custom_call.1} parent=1 // pred_check_branch
      %12 = sbr.rel (0) target = $region9
    $region8: #{tpu_custom_call.1} parent=1 // pred_region
      _
    $region9: #{tpu_custom_call.1} parent=1 // pred_fallthru
      _
    // Predicated region
    $region10: #{tpu_custom_call.1} parent=1 // pred_check
      _
    $region11: #{tpu_custom_call.1} parent=1 // pred_check_branch
      %14 = sbr.rel (0) target = $region13
    $region12: #{tpu_custom_call.1} parent=1 // pred_region
      _
    $region13: #{tpu_custom_call.1} parent=1 // pred_fallthru
      _
    %v15 = vld [vmem:[%s1] sm:$0xff]
    %v16 = vld [vmem:[%s1 + $0x8] sm:$0xff]
    %v17 = vld [vmem:[%s0] sm:$0xff]
    %v18 = vld [vmem:[%s0 + $0x8] sm:$0xff]
    %v19 = vld [vmem:[%s0 + $0x10] sm:$0xff]
    %v20 = vld [vmem:[%s0 + $0x18] sm:$0xff]
    %v21 = vld [vmem:[%s0 + $0x20] sm:$0xff]
    %v22 = vld [vmem:[%s0 + $0x28] sm:$0xff]
    %v23 = vld [vmem:[%s0 + $0x30] sm:$0xff]
    %v24 = vld [vmem:[%s0 + $0x38] sm:$0xff]
    %v25 = vld [vmem:[%s0 + $0x40] sm:$0xff]
    %v26 = vld [vmem:[%s0 + $0x48] sm:$0xff]
    %v27 = vld [vmem:[%s0 + $0x50] sm:$0xff]
    %v28 = vld [vmem:[%s0 + $0x58] sm:$0xff]
    %v29 = vld [vmem:[%s0 + $0x60] sm:$0xff]
    %v30 = vld [vmem:[%s0 + $0x68] sm:$0xff]
    %v31 = vld [vmem:[%s0 + $0x70] sm:$0xff]
    %v32 = vld [vmem:[%s0 + $0x78] sm:$0xff]
    %v33 = vld [vmem:[%s0 + $0x80] sm:$0xff]
    %v34 = vld [vmem:[%s0 + $0x88] sm:$0xff]
    %v35 = vld [vmem:[%s0 + $0x90] sm:$0xff]
    %v36 = vld [vmem:[%s0 + $0x98] sm:$0xff]
    %v37 = vld [vmem:[%s0 + $0xa0] sm:$0xff]
    %v38 = vld [vmem:[%s0 + $0xa8] sm:$0xff]
    %v39 = vld [vmem:[%s0 + $0xb0] sm:$0xff]
    %v40 = vld [vmem:[%s0 + $0xb8] sm:$0xff]
    %v41 = vld [vmem:[%s0 + $0xc0] sm:$0xff]
    %v42 = vld [vmem:[%s0 + $0xc8] sm:$0xff]
    %v43 = vld [vmem:[%s0 + $0xd0] sm:$0xff]
    %v44 = vld [vmem:[%s0 + $0xd8] sm:$0xff]
    %v45 = vld [vmem:[%s0 + $0xe0] sm:$0xff]
    %v46 = vld [vmem:[%s0 + $0xe8] sm:$0xff]
    %v47 = vld [vmem:[%s0 + $0xf0] sm:$0xff]
    %v48 = vld [vmem:[%s0 + $0xf8] sm:$0xff]
    %49 = vmatprep.subr.mxu0 0.0
    %50 = vmatpush1.msra.mxu0 %v32
    %51 = vmatprep.subr.mxu0 0.0
    %52 = vmatpush1.msra.mxu0 %v31
    %53 = vmatprep.subr.mxu0 0.0
    %54 = vmatpush1.msra.mxu0 %v30
    %55 = vmatprep.subr.mxu0 0.0
    %56 = vmatpush1.msra.mxu0 %v29
    %57 = vmatprep.subr.mxu0 0.0
    %58 = vmatpush1.msra.mxu0 %v28
    %59 = vmatprep.subr.mxu0 0.0
    %60 = vmatpush1.msra.mxu0 %v27
    %61 = vmatprep.subr.mxu0 0.0
    %62 = vmatpush1.msra.mxu0 %v26
    %63 = vmatprep.subr.mxu0 0.0
    %64 = vmatpush1.msra.mxu0 %v25
    %65 = vmatprep.subr.mxu0 0.0
    %66 = vmatpush1.msra.mxu0 %v24
    %67 = vmatprep.subr.mxu0 0.0
    %68 = vmatpush1.msra.mxu0 %v23
    %69 = vmatprep.subr.mxu0 0.0
    %70 = vmatpush1.msra.mxu0 %v22
    %71 = vmatprep.subr.mxu0 0.0
    %72 = vmatpush1.msra.mxu0 %v21
    %73 = vmatprep.subr.mxu0 0.0
    %74 = vmatpush1.msra.mxu0 %v20
    %75 = vmatprep.subr.mxu0 0.0
    %76 = vmatpush1.msra.mxu0 %v19
    %77 = vmatprep.subr.mxu0 0.0
    %78 = vmatpush1.msra.mxu0 %v18
    %79 = vmatprep.subr.mxu0 0.0
    %80 = vmatpush1.msra.mxu0 %v17
    %81 = vmatprep.subr.mxu0 0.0
    %82 = vmatpush2.msra.mxu0 %v48
    %83 = vmatprep.subr.mxu0 0.0
    %84 = vmatpush2.msra.mxu0 %v47
    %85 = vmatprep.subr.mxu0 0.0
    %86 = vmatpush2.msra.mxu0 %v46
    %87 = vmatprep.subr.mxu0 0.0
    %88 = vmatpush2.msra.mxu0 %v45
    %89 = vmatprep.subr.mxu0 0.0
    %90 = vmatpush2.msra.mxu0 %v44
    %91 = vmatprep.subr.mxu0 0.0
    %92 = vmatpush2.msra.mxu0 %v43
    %93 = vmatprep.subr.mxu0 0.0
    %94 = vmatpush2.msra.mxu0 %v42
    %95 = vmatprep.subr.mxu0 0.0
    %96 = vmatpush2.msra.mxu0 %v41
    %97 = vmatprep.subr.mxu0 0.0
    %98 = vmatpush2.msra.mxu0 %v40
    %99 = vmatprep.subr.mxu0 0.0
    %100 = vmatpush2.msra.mxu0 %v39
    %101 = vmatprep.subr.mxu0 0.0
    %102 = vmatpush2.msra.mxu0 %v38
    %103 = vmatprep.subr.mxu0 0.0
    %104 = vmatpush2.msra.mxu0 %v37
    %105 = vmatprep.subr.mxu0 0.0
    %106 = vmatpush2.msra.mxu0 %v36
    %107 = vmatprep.subr.mxu0 0.0
    %108 = vmatpush2.msra.mxu0 %v35
    %109 = vmatprep.subr.mxu0 0.0
    %110 = vmatpush2.msra.mxu0 %v34
    %111 = vmatprep.subr.mxu0 0.0
    %112 = vmatpush2.msra.mxu0 %v33
    %113 = vmatprep.mubr.f32.mxu0 %v16
    %114 = vmatmul.mubr.f32.gmra.mxu0 %v15
    %v115 = vpop.f32.mrf.mxu0
    %v116 = vadd.f32 0.0, %v115
    %v117 = vpop.f32.mrf.mxu0
    %118 = vdwg.mxu0
    %s119 = smul.u32 0, 2
    %s120 = scalar_lea.vmem %s2, %s119
    %v121 = vld [vmem:[%s120] sm:$0x1]
    %v122 = vadd.f32 %v121, 1e-09
    %v123 = vrcp.pop %v122
    %v124 = vmul.f32 %v122, %v123
    %v125 = vsub.f32 2.0, %v124
    %v126 = vmul.f32 %v123, %v125
    %v127 = vmul.f32 %v122, %v126
    %v128 = vsub.f32 2.0, %v127
    %v129 = vmul.f32 %v126, %v128
    %v130 = vlaneseq
    %v131 = vshrl.u32 %v130, 7
    %v132 = vsub.s32 0, %v131
    %v133 = vrot.slane %v129, %v132
    %v134 = vmul.f32 %v116, %v133
    %vm135 = vcmask 117760
    %136 = vst.msk [vmem:[#allocation2] sm:$0xf] %vm135, %v134
    %s137 = sadd.s32 %s119, 1
    %s138 = scalar_lea.vmem %s2, %s137
    %v139 = vld [vmem:[%s138] sm:$0x1]
    %v140 = vadd.f32 %v139, 1e-09
    %v141 = vrcp.pop %v140
    %v142 = vmul.f32 %v140, %v141
    %v143 = vsub.f32 2.0, %v142
    %v144 = vmul.f32 %v141, %v143
    %v145 = vmul.f32 %v140, %v144
    %v146 = vsub.f32 2.0, %v145
    %v147 = vmul.f32 %v144, %v146
    %v148 = vlaneseq
    %v149 = vshrl.u32 %v148, 7
    %v150 = vsub.s32 0, %v149
    %v151 = vrot.slane %v147, %v150
    %v152 = vmul.f32 %v116, %v151
    %vm153 = vcmask 121860
    %154 = vst.msk [vmem:[#allocation2] sm:$0xf0] %vm153, %v152
    // Predicated region
    $region14: #{tpu_custom_call.1} parent=1 // pred_check
      _
    $region15: #{tpu_custom_call.1} parent=1 // pred_check_branch
      %156 = sbr.rel (0) target = $region17
    $region16: #{tpu_custom_call.1} parent=1 // pred_region
      %s158 = ssub.s32 128, 128
      %159 = vsyncadd [#allocation3], %s158
      %s161 = sshll.u32 [#allocation2], 4
      %s162 = int_to_ptr.vmem [resolvable:$true] %s161
      %164 = dma.vmem_to_hbm [thread:$0]  %s162, 128, %s3, [#allocation3]
    $region17: #{tpu_custom_call.1} parent=1 // pred_fallthru
      _
    // Predicated region
    $region18: #{tpu_custom_call.1} parent=1 // pred_check
      _
    $region19: #{tpu_custom_call.1} parent=1 // pred_check_branch
      %166 = sbr.rel (0) target = $region21
    $region20: #{tpu_custom_call.1} parent=1 // pred_region
      %167 = dma.done [#allocation3], 128
    $region21: #{tpu_custom_call.1} parent=1 // pred_fallthru
      _
    %168 = vsyncpa [#allocation3], 1

</llo_original>
